<compile_context>
chip_gen: v7x
topology: tpu7x:2x2x1
jax: 0.10.0
libtpu: 0.0.40
codegen_flags: <defaults>
</compile_context>

<pallas_src>
import jax
import jax.numpy as jnp
from jax.experimental import pallas as pl
from jax.experimental.pallas import tpu as pltpu


def _pos_embed_kernel(col_ref, row_ref, out_ref):
    # col_ref: (tf, 1, W) f32 -- col_embed.weight[:W].T with a unit y axis
    # row_ref: (tf, H, 1) f32 -- row_embed.weight[:H].T with a unit x axis
    # out_ref: (tf, H, W)     -- one (channel-chunk, half, batch) output block
    tf, H, W = out_ref.shape
    half = pl.program_id(1)

    @pl.when(half == 0)
    def _():
        # pos[c, y, x] = col[c, x]: broadcast the unit y (sublane) axis to H.
        out_ref[...] = jnp.broadcast_to(col_ref[...], (tf, H, W))

    @pl.when(half == 1)
    def _():
        # pos[c, y, x] = row[c, y]: broadcast the unit x (lane) axis to W.
        out_ref[...] = jnp.broadcast_to(row_ref[...], (tf, H, W))


def _round_up(n, m):
    return ((n + m - 1) // m) * m


def _pick_tile_f(F, cap=128):
    """Largest divisor of F that is <= cap (falls back to F for awkward F)."""
    best = 1
    for t in range(min(F, cap), 0, -1):
        if F % t == 0:
            best = t
            break
    if best < 8 and F > cap:
        # Prime-ish large F: one big chunk beats hundreds of 0.35us grid steps.
        best = F
    return best


def position_embedding_learned(tensor, row_weight, col_weight):
    """tensor: (B, C, H, W) -- only its shape is used (like the PyTorch module).
    row_weight, col_weight: (50, F) learned embedding tables.
    Returns pos: (B, 2F, H, W) float32."""
    B = int(tensor.shape[0])
    H, W = int(tensor.shape[-2]), int(tensor.shape[-1])
    F = int(row_weight.shape[1])
    if col_weight.shape[1] != F:
        raise ValueError("row/col embedding feature sizes must match")
    if H > row_weight.shape[0] or W > col_weight.shape[0]:
        raise ValueError("spatial size exceeds the embedding table size (50)")

    # Embedding lookup of arange(W)/arange(H) == slicing the first rows.
    # The tiny transposes / unit-dim reshapes are done ONCE here so the kernel
    # needs no in-kernel relayout: x lives on lanes, y lives on sublanes.
    col_t = jnp.transpose(col_weight[:W].astype(jnp.float32)).reshape(F, 1, W)
    row_t = jnp.transpose(row_weight[:H].astype(jnp.float32)).reshape(F, H, 1)

    tf = _pick_tile_f(F)
    nf = F // tf

    # Double-buffered, (8,128)-padded block footprint -> scoped VMEM budget.
    col_blk = tf * 8 * _round_up(W, 128) * 4
    row_blk = tf * _round_up(H, 8) * 128 * 4
    out_blk = tf * _round_up(H, 8) * _round_up(W, 128) * 4
    vmem_limit = max(2 * (col_blk + row_blk + out_blk) + (4 << 20), 32 << 20)

    # Pure data movement: no flops, no transcendentals.
    cost = pl.CostEstimate(
        flops=0,
        transcendentals=0,
        bytes_accessed=4 * (B * 2 * F * H * W + F * (H + W)),
    )

    # Grid: (channel chunk, half, batch).  batch is innermost so the output
    # block changes every step (good pipelining); the table chunks' block index
    # only changes with the outermost axis, so they are fetched once per chunk.
    out = pl.pallas_call(
        _pos_embed_kernel,
        out_shape=jax.ShapeDtypeStruct((B, 2 * F, H, W), jnp.float32),
        grid_spec=pltpu.PrefetchScalarGridSpec(
            num_scalar_prefetch=0,
            grid=(nf, 2, B),
            in_specs=[
                pl.BlockSpec((tf, 1, W), lambda f, h, b: (f, 0, 0)),
                pl.BlockSpec((tf, H, 1), lambda f, h, b: (f, 0, 0)),
            ],
            out_specs=pl.BlockSpec((None, tf, H, W),
                                   lambda f, h, b: (b, h * nf + f, 0, 0)),
        ),
        compiler_params=pltpu.CompilerParams(
            # All axes write disjoint output blocks -> "parallel" everywhere.
            # On v7x, if a trace shows both halves on one TensorCore, the first
            # axis can be switched to pltpu.CORE_PARALLEL.
            dimension_semantics=("parallel", "parallel", "parallel"),
            vmem_limit_bytes=int(vmem_limit),
        ),
        cost_estimate=cost,
    )(col_t, row_t)
    return out


def _reference(tensor, row_weight, col_weight):
    """Pure-JAX reference matching the PyTorch forward."""
    B = tensor.shape[0]
    H, W = tensor.shape[-2], tensor.shape[-1]
    x_emb = col_weight[:W]                                     # (W, F)
    y_emb = row_weight[:H]                                     # (H, F)
    part_x = jnp.broadcast_to(x_emb[None, :, :], (H, W, x_emb.shape[1]))
    part_y = jnp.broadcast_to(y_emb[:, None, :], (H, W, y_emb.shape[1]))
    pos = jnp.concatenate([part_x, part_y], axis=-1)           # (H, W, 2F)
    pos = jnp.transpose(pos, (2, 0, 1))[None]                  # (1, 2F, H, W)
    return jnp.broadcast_to(pos, (B,) + pos.shape[1:]).astype(jnp.float32)


if __name__ == "__main__":
    key = jax.random.PRNGKey(0)
    k_x, k_row, k_col = jax.random.split(key, 3)

    num_pos_feats = 32          # small num_pos_feats (module default is 256)
    B, C, H, W = 2, 4, 16, 16

    # Deterministic "learned" parameters, uniform [0, 1) like nn.init.uniform_.
    row_weight = jax.random.uniform(k_row, (50, num_pos_feats), dtype=jnp.float32)
    col_weight = jax.random.uniform(k_col, (50, num_pos_feats), dtype=jnp.float32)

    x = jax.random.normal(k_x, (B, C, H, W), dtype=jnp.float32)

    pos = jax.block_until_ready(position_embedding_learned(x, row_weight, col_weight))
    ref = _reference(x, row_weight, col_weight)
    assert pos.shape == (B, 2 * num_pos_feats, H, W), pos.shape
    assert bool(jnp.array_equal(pos, ref)), "mismatch vs reference"   # bit-exact

    # Non-power-of-two spatial / feature sizes (review asked for odd-shape coverage).
    x2 = jax.random.normal(k_x, (2, 3, 10, 12), dtype=jnp.float32)
    rw2, cw2 = row_weight[:, :24], col_weight[:, :24]
    pos2 = jax.block_until_ready(position_embedding_learned(x2, rw2, cw2))
    ref2 = _reference(x2, rw2, cw2)
    assert pos2.shape == (2, 48, 10, 12), pos2.shape
    assert bool(jnp.array_equal(pos2, ref2)), "mismatch vs reference (odd shapes)"

    print("KERNEL_OK")
</pallas_src>

<mosaic_0001>
module attributes {stable_mosaic.version = 11 : i64} {
  func.func @_pos_embed_kernel(%arg0: i32, %arg1: i32, %arg2: i32, %arg3: memref<32x1x16xf32, #tpu.memory_space<vmem>>, %arg4: memref<32x16x1xf32, #tpu.memory_space<vmem>>, %arg5: memref<1x32x16x16xf32, #tpu.memory_space<vmem>>) attributes {dimension_semantics = [#tpu.dimension_semantics<parallel>, #tpu.dimension_semantics<parallel>, #tpu.dimension_semantics<parallel>], iteration_bounds = array<i64: 1, 2, 2>, scalar_prefetch = 0 : i64, scratch_operands = 0 : i64, tpu.core_type = #tpu.core_type<tc>, window_params = [{transform_indices = @transform_0, window_bounds = array<i64: 32, 1, 16>}, {transform_indices = @transform_1, window_bounds = array<i64: 32, 16, 1>}, {transform_indices = @transform_2, window_bounds = array<i64: 1, 32, 16, 16>}]} {
    %c0_i32 = arith.constant 0 : i32
    %0 = arith.cmpi eq, %arg1, %c0_i32 : i32
    %1 = arith.extui %0 : i1 to i32
    %c0_i32_0 = arith.constant 0 : i32
    %2 = arith.cmpi ne, %1, %c0_i32_0 : i32
    scf.if %2 {
      %c0 = arith.constant 0 : index
      %c0_2 = arith.constant 0 : index
      %c0_3 = arith.constant 0 : index
      %6 = vector.load %arg3[%c0, %c0_2, %c0_3] : memref<32x1x16xf32, #tpu.memory_space<vmem>>, vector<32x1x16xf32>
      %7 = vector.shape_cast %6 : vector<32x1x16xf32> to vector<32x1x16xf32>
      %8 = vector.broadcast %7 : vector<32x1x16xf32> to vector<32x16x16xf32>
      %c0_4 = arith.constant 0 : index
      %c0_5 = arith.constant 0 : index
      %c0_6 = arith.constant 0 : index
      %c0_7 = arith.constant 0 : index
      %9 = vector.load %arg5[%c0_4, %c0_5, %c0_6, %c0_7] : memref<1x32x16x16xf32, #tpu.memory_space<vmem>>, vector<1x32x16x16xf32>
      %10 = vector.shape_cast %9 : vector<1x32x16x16xf32> to vector<32x16x16xf32>
      %11 = vector.shape_cast %8 : vector<32x16x16xf32> to vector<1x32x16x16xf32>
      tpu.vector_store %arg5[%c0_4, %c0_5, %c0_6, %c0_7], %11 {strides = array<i32>} : memref<1x32x16x16xf32, #tpu.memory_space<vmem>>, vector<1x32x16x16xf32>,
    } else {
    }
    %c1_i32 = arith.constant 1 : i32
    %3 = arith.cmpi eq, %arg1, %c1_i32 : i32
    %4 = arith.extui %3 : i1 to i32
    %c0_i32_1 = arith.constant 0 : i32
    %5 = arith.cmpi ne, %4, %c0_i32_1 : i32
    scf.if %5 {
      %c0 = arith.constant 0 : index
      %c0_2 = arith.constant 0 : index
      %c0_3 = arith.constant 0 : index
      %6 = vector.load %arg4[%c0, %c0_2, %c0_3] : memref<32x16x1xf32, #tpu.memory_space<vmem>>, vector<32x16x1xf32>
      %7 = vector.shape_cast %6 : vector<32x16x1xf32> to vector<32x16x1xf32>
      %8 = vector.broadcast %7 : vector<32x16x1xf32> to vector<32x16x16xf32>
      %c0_4 = arith.constant 0 : index
      %c0_5 = arith.constant 0 : index
      %c0_6 = arith.constant 0 : index
      %c0_7 = arith.constant 0 : index
      %9 = vector.load %arg5[%c0_4, %c0_5, %c0_6, %c0_7] : memref<1x32x16x16xf32, #tpu.memory_space<vmem>>, vector<1x32x16x16xf32>
      %10 = vector.shape_cast %9 : vector<1x32x16x16xf32> to vector<32x16x16xf32>
      %11 = vector.shape_cast %8 : vector<32x16x16xf32> to vector<1x32x16x16xf32>
      tpu.vector_store %arg5[%c0_4, %c0_5, %c0_6, %c0_7], %11 {strides = array<i32>} : memref<1x32x16x16xf32, #tpu.memory_space<vmem>>, vector<1x32x16x16xf32>,
    } else {
    }
    return
  }
  func.func @transform_0(%arg0: i32, %arg1: i32, %arg2: i32) -> (i32, i32, i32) {
    %c0_i32 = arith.constant 0 : i32
    %c0_i32_0 = arith.constant 0 : i32
    %c0_i32_1 = arith.constant 0 : i32
    return %arg0, %c0_i32, %c0_i32_0 : i32, i32, i32
  }
  func.func @transform_1(%arg0: i32, %arg1: i32, %arg2: i32) -> (i32, i32, i32) {
    %c0_i32 = arith.constant 0 : i32
    %c0_i32_0 = arith.constant 0 : i32
    %c0_i32_1 = arith.constant 0 : i32
    return %arg0, %c0_i32, %c0_i32_0 : i32, i32, i32
  }
  func.func @transform_2(%arg0: i32, %arg1: i32, %arg2: i32) -> (i32, i32, i32, i32) {
    %c1_i32 = arith.constant 1 : i32
    %0 = arith.muli %arg1, %c1_i32 : i32
    %1 = arith.addi %0, %arg0 : i32
    %c0_i32 = arith.constant 0 : i32
    %c0_i32_0 = arith.constant 0 : i32
    %c0_i32_1 = arith.constant 0 : i32
    return %arg2, %1, %c0_i32, %c0_i32_0 : i32, i32, i32, i32
  }
}

</mosaic_0001>

<llo_original>
// kernel: tpu_custom_call.1
$region0: #{tpu_custom_call.1}
  #allocation0 [shape = 'u32[]', space=smem, size = 0x4, offset = 0x4, fixed_abs, tag = 'smem constant byte address 0x4 - core index']
  #allocation1 [shape = 'u32[144,128]{1,0:T(1,128)}', space=vmem, size = 0x12000, scoped, tag = 'internal scratch']
  %s0 = inlined_call_operand.vmem [shape: f32[32,1,16], index: 0, kind: input, shape index: {}]
  %s1 = inlined_call_operand.vmem [shape: f32[32,16,1], index: 1, kind: input, shape index: {}]
  %s2 = inlined_call_operand.vmem [shape: f32[2,64,16,16], index: 2, kind: output, shape index: {}]
  %s3 = sld [smem:[#allocation0]]
  $region49: #{tpu_custom_call.1} parent=0
    _
  %s5 = ssub.s32 1, %s3
  %s6 = scalar_select 0, %s5, %s3
  loop: start=0, step=1, limit=6
  $region2: #{tpu_custom_call.1} parent=0 // loop_pre_header
    _
  $region3: #{tpu_custom_call.1} parent=0 // loop_header
    %s8 = sphi 0, %s12
    %p9 = scmp.ge.s32.totalorder %s8, 6
    %s15 = sphi 0, %s34
    %s16 = sphi 0, %s30
    %s17 = sphi 0, %s26
    %s18 = sphi 0, %s15
    %s19 = sphi 0, %s16
    %s20 = sphi 0, %s17
    %s21 = sphi 0, %s18
    %s22 = sphi 0, %s19
    %s23 = sphi 0, %s20
    %s37 = sphi 0, %s39
    %s40 = sphi 0, %s37
    %s41 = sphi 0, %s40
    %s57 = sphi 0, %s41
    %s63 = sphi 0, %s65
    %s66 = sphi 0, %s63
    %s67 = sphi 0, %s66
    %s83 = sphi 0, %s67
    %s93 = sphi 0, %s95
    %s96 = sphi 0, %s93
    %s97 = sphi 0, %s96
    %s113 = sphi 0, %s97
  $region4: #{tpu_custom_call.1} parent=0 // loop_header_branch
    %11 = sbr.rel (%p9) target = $region8
  $region5: #{tpu_custom_call.1} parent=0 // loop_body
    %s13 = ssub.s32 %s8, 1
    %s14 = ssub.s32 %s8, 2
    %s24 = sadd.s32 1, %s17
    %p25 = scmp.ge.s32.totalorder %s24, 2
    %s26 = scalar_select %p25, 0, %s24
    %s27 = sadd.s32 1, %s16
    %s28 = scalar_select %p25, %s27, %s16
    %p29 = scmp.ge.s32.totalorder %s28, 2
    %s30 = scalar_select %p29, 0, %s28
    %s31 = sadd.s32 1, %s15
    %s32 = scalar_select %p29, %s31, %s15
    %p33 = scmp.ge.s32.totalorder %s32, 1
    %s34 = scalar_select %p33, 0, %s32
    %s35 = ssub.s32 %s15, %s34
    %p36 = scmp.eq.s32.totalorder %s35, 0
    %s38 = sadd.s32 %s37, 1
    %s39 = scalar_select %p36, %s37, %s38
    %p42 = pneg %p36
    %p43 = scmp.eq.s32.totalorder %s8, 3
    %p44 = por %p42, %p43
    %p45 = scmp.ne.s32.totalorder %s37, %s40
    %p46 = scmp.eq.s32.totalorder %s8, 0
    %p47 = por %p45, %p46
    %p48 = scmp.ne.s32.totalorder %s37, %s40
    %p49 = scmp.eq.s32.totalorder %s13, 3
    %p50 = por %p48, %p49
    %p51 = scmp.ne.s32.totalorder %s40, %s41
    %p52 = scmp.eq.s32.totalorder %s13, 0
    %p53 = por %p51, %p52
    %p54 = scmp.ne.s32.totalorder %s40, %s41
    %p55 = scmp.eq.s32.totalorder %s14, 3
    %p56 = por %p54, %p55
    %p58 = scmp.ne.s32.totalorder %s41, %s57
    %p59 = scmp.eq.s32.totalorder %s14, 0
    %p60 = por %p58, %p59
    %s61 = ssub.s32 %s15, %s34
    %p62 = scmp.eq.s32.totalorder %s61, 0
    %s64 = sadd.s32 %s63, 1
    %s65 = scalar_select %p62, %s63, %s64
    %p68 = pneg %p62
    %p69 = scmp.eq.s32.totalorder %s8, 3
    %p70 = por %p68, %p69
    %p71 = scmp.ne.s32.totalorder %s63, %s66
    %p72 = scmp.eq.s32.totalorder %s8, 0
    %p73 = por %p71, %p72
    %p74 = scmp.ne.s32.totalorder %s63, %s66
    %p75 = scmp.eq.s32.totalorder %s13, 3
    %p76 = por %p74, %p75
    %p77 = scmp.ne.s32.totalorder %s66, %s67
    %p78 = scmp.eq.s32.totalorder %s13, 0
    %p79 = por %p77, %p78
    %p80 = scmp.ne.s32.totalorder %s66, %s67
    %p81 = scmp.eq.s32.totalorder %s14, 3
    %p82 = por %p80, %p81
    %p84 = scmp.ne.s32.totalorder %s67, %s83
    %p85 = scmp.eq.s32.totalorder %s14, 0
    %p86 = por %p84, %p85
    %s87 = sadd.s32 %s16, %s15
    %s88 = sadd.s32 %s30, %s34
    %s89 = ssub.s32 %s17, %s26
    %s90 = ssub.s32 %s87, %s88
    %s91 = sor.u32 %s89, %s90
    %p92 = scmp.eq.s32.totalorder %s91, 0
    %s94 = sadd.s32 %s93, 1
    %s95 = scalar_select %p92, %s93, %s94
    %p98 = pneg %p92
    %p99 = scmp.eq.s32.totalorder %s8, 3
    %p100 = por %p98, %p99
    %p101 = scmp.ne.s32.totalorder %s93, %s96
    %p102 = scmp.eq.s32.totalorder %s8, 0
    %p103 = por %p101, %p102
    %p104 = scmp.ne.s32.totalorder %s93, %s96
    %p105 = scmp.eq.s32.totalorder %s13, 3
    %p106 = por %p104, %p105
    %p107 = scmp.ne.s32.totalorder %s96, %s97
    %p108 = scmp.eq.s32.totalorder %s13, 0
    %p109 = por %p107, %p108
    %p110 = scmp.ne.s32.totalorder %s96, %s97
    %p111 = scmp.eq.s32.totalorder %s14, 3
    %p112 = por %p110, %p111
    %p114 = scmp.ne.s32.totalorder %s97, %s113
    %p115 = scmp.eq.s32.totalorder %s14, 0
    %p116 = por %p114, %p115
    %p117 = scmp.le.s32.totalorder 1, %s8
    %p118 = scmp.lt.s32.totalorder %s8, 5
    %p119 = pnand %p117, %p118
    %p120 = pneg %p119
    // Predicated region
    $region9: #{tpu_custom_call.1} parent=5 // pred_check
      _
    $region10: #{tpu_custom_call.1} parent=5 // pred_check_branch
      %122 = sbr.rel (%p119) target = $region12
    $region11: #{tpu_custom_call.1} parent=5 // pred_region
      %s123 = ssub.s32 %s8, 1
      // Predicated region
      $region13: #{tpu_custom_call.1} parent=11 // pred_check
        %p124 = pneg %p53
      $region14: #{tpu_custom_call.1} parent=11 // pred_check_branch
        %126 = sbr.rel (%p124) target = $region16
      $region15: #{tpu_custom_call.1} parent=11 // pred_region
        %s127 = smul.u32 32, %s18
        %p128 = scmp.lt.s32.totalorder %s127, 31
        %s129 = scalar_select %p128, %s127, 31
        %s130 = scalar_lea.vmem %s0, %s129
        %s131 = smul.u32 32, %s18
      $region16: #{tpu_custom_call.1} parent=11 // pred_fallthru
        _
      // Predicated region
      $region17: #{tpu_custom_call.1} parent=11 // pred_check
        %p132 = pneg %p79
      $region18: #{tpu_custom_call.1} parent=11 // pred_check_branch
        %134 = sbr.rel (%p132) target = $region20
      $region19: #{tpu_custom_call.1} parent=11 // pred_region
        %s135 = smul.u32 32, %s18
        %p136 = scmp.lt.s32.totalorder %s135, 31
        %s137 = scalar_select %p136, %s135, 31
        %s138 = smul.addr %s137, 2
        %s139 = smul.addr %s138, 8
        %s140 = scalar_lea.vmem %s1, %s139
        %s141 = smul.u32 32, %s18
      $region20: #{tpu_custom_call.1} parent=11 // pred_fallthru
        _
    $region12: #{tpu_custom_call.1} parent=5 // pred_fallthru
      _
    %p142 = scmp.lt.s32.totalorder %s8, 4
    // Predicated region
    $region21: #{tpu_custom_call.1} parent=5 // pred_check
      %p143 = pneg %p142
    $region22: #{tpu_custom_call.1} parent=5 // pred_check_branch
      %145 = sbr.rel (%p143) target = $region24
    $region23: #{tpu_custom_call.1} parent=5 // pred_region
      _
    $region24: #{tpu_custom_call.1} parent=5 // pred_fallthru
      _
    %p146 = scmp.le.s32.totalorder 1, %s8
    %p147 = scmp.lt.s32.totalorder %s8, 5
    %p148 = pnand %p146, %p147
    %p149 = pneg %p148
    // Predicated region
    $region25: #{tpu_custom_call.1} parent=5 // pred_check
      _
    $region26: #{tpu_custom_call.1} parent=5 // pred_check_branch
      %151 = sbr.rel (%p148) target = $region28
    $region27: #{tpu_custom_call.1} parent=5 // pred_region
      %s152 = ssub.s32 %s8, 1
      %s153 = smul.u32 32, %s18
      %p154 = scmp.lt.s32.totalorder %s153, 31
      %s155 = scalar_select %p154, %s153, 31
      %s156 = scalar_lea.vmem %s0, %s155
      %p157 = pneg %p53
      %p158 = pneg %p50
      %s159 = smul.u32 32, %s18
      %p160 = scmp.lt.s32.totalorder %s159, 31
      %s161 = scalar_select %p160, %s159, 31
      %s162 = smul.addr %s161, 2
      %s163 = smul.addr %s162, 8
      %s164 = scalar_lea.vmem %s1, %s163
      %p165 = pneg %p79
      %p166 = pneg %p76
      %p167 = pneg %p109
      %p168 = pneg %p106
      %s169 = sadd.s32 %s19, %s18
      %s170 = smul.u32 32, %s169
      %p171 = scmp.lt.s32.totalorder %s20, 1
      %s172 = scalar_select %p171, %s20, 1
      %p173 = scmp.lt.s32.totalorder %s170, 63
      %s174 = scalar_select %p173, %s170, 63
      %s175 = smul.addr %s174, 2
      %s176 = smul.addr %s172, 128
      %s177 = sadd.s32 %s175, %s176
      %s178 = smul.addr %s177, 8
      %s179 = scalar_lea.vmem %s2, %s178
      %s180 = smul.u32 32, %s18
      %p181 = scmp.lt.s32.totalorder %s180, 31
      %s182 = scalar_select %p181, %s180, 31
      %s183 = scalar_lea.vmem %s0, %s182
      %s184 = smul.u32 32, %s18
      %s185 = smul.u32 32, %s18
      %p186 = scmp.lt.s32.totalorder %s185, 31
      %s187 = scalar_select %p186, %s185, 31
      %s188 = smul.addr %s187, 2
      %s189 = smul.addr %s188, 8
      %s190 = scalar_lea.vmem %s1, %s189
      %s191 = smul.u32 32, %s18
      %s192 = sadd.s32 %s19, %s18
      %s193 = smul.u32 32, %s192
      %p194 = scmp.lt.s32.totalorder %s20, 1
      %s195 = scalar_select %p194, %s20, 1
      %p196 = scmp.lt.s32.totalorder %s193, 63
      %s197 = scalar_select %p196, %s193, 63
      %s198 = smul.addr %s197, 2
      %s199 = smul.addr %s195, 128
      %s200 = sadd.s32 %s198, %s199
      %s201 = smul.addr %s200, 8
      %s202 = scalar_lea.vmem %s2, %s201
      %s203 = sadd.s32 %s19, %s18
      %s204 = smul.u32 32, %s203
      %p205 = scmp.eq.s32.totalorder %s19, 0
      // Predicated region
      $region29: #{tpu_custom_call.1} parent=27 // pred_check
        %p206 = pneg %p205
      $region30: #{tpu_custom_call.1} parent=27 // pred_check_branch
        %208 = sbr.rel (%p206) target = $region32
      $region31: #{tpu_custom_call.1} parent=27 // pred_region
        %v209 = vld [vmem:[%s183] sm:$0x1]
        %v210 = vld [vmem:[%s183 + $0x1] sm:$0x1]
        %v211 = vld [vmem:[%s183 + $0x2] sm:$0x1]
        %v212 = vld [vmem:[%s183 + $0x3] sm:$0x1]
        %v213 = vld [vmem:[%s183 + $0x4] sm:$0x1]
        %v214 = vld [vmem:[%s183 + $0x5] sm:$0x1]
        %v215 = vld [vmem:[%s183 + $0x6] sm:$0x1]
        %v216 = vld [vmem:[%s183 + $0x7] sm:$0x1]
        %v217 = vld [vmem:[%s183 + $0x8] sm:$0x1]
        %v218 = vld [vmem:[%s183 + $0x9] sm:$0x1]
        %v219 = vld [vmem:[%s183 + $0xa] sm:$0x1]
        %v220 = vld [vmem:[%s183 + $0xb] sm:$0x1]
        %v221 = vld [vmem:[%s183 + $0xc] sm:$0x1]
        %v222 = vld [vmem:[%s183 + $0xd] sm:$0x1]
        %v223 = vld [vmem:[%s183 + $0xe] sm:$0x1]
        %v224 = vld [vmem:[%s183 + $0xf] sm:$0x1]
        %v225 = vld [vmem:[%s183 + $0x10] sm:$0x1]
        %v226 = vld [vmem:[%s183 + $0x11] sm:$0x1]
        %v227 = vld [vmem:[%s183 + $0x12] sm:$0x1]
        %v228 = vld [vmem:[%s183 + $0x13] sm:$0x1]
        %v229 = vld [vmem:[%s183 + $0x14] sm:$0x1]
        %v230 = vld [vmem:[%s183 + $0x15] sm:$0x1]
        %v231 = vld [vmem:[%s183 + $0x16] sm:$0x1]
        %v232 = vld [vmem:[%s183 + $0x17] sm:$0x1]
        %v233 = vld [vmem:[%s183 + $0x18] sm:$0x1]
        %v234 = vld [vmem:[%s183 + $0x19] sm:$0x1]
        %v235 = vld [vmem:[%s183 + $0x1a] sm:$0x1]
        %v236 = vld [vmem:[%s183 + $0x1b] sm:$0x1]
        %v237 = vld [vmem:[%s183 + $0x1c] sm:$0x1]
        %v238 = vld [vmem:[%s183 + $0x1d] sm:$0x1]
        %v239 = vld [vmem:[%s183 + $0x1e] sm:$0x1]
        %v240 = vld [vmem:[%s183 + $0x1f] sm:$0x1]
        %v273 = vlaneseq
        %v274 = vshrl.u32 %v273, 7
        %v275 = vsub.s32 0, %v274
        %v276 = vrot.slane %v209, %v275
        %v277 = vlaneseq
        %v278 = vshrl.u32 %v277, 7
        %v279 = vsub.s32 0, %v278
        %v280 = vrot.slane %v210, %v279
        %v281 = vlaneseq
        %v282 = vshrl.u32 %v281, 7
        %v283 = vsub.s32 0, %v282
        %v284 = vrot.slane %v211, %v283
        %v285 = vlaneseq
        %v286 = vshrl.u32 %v285, 7
        %v287 = vsub.s32 0, %v286
        %v288 = vrot.slane %v212, %v287
        %v289 = vlaneseq
        %v290 = vshrl.u32 %v289, 7
        %v291 = vsub.s32 0, %v290
        %v292 = vrot.slane %v213, %v291
        %v293 = vlaneseq
        %v294 = vshrl.u32 %v293, 7
        %v295 = vsub.s32 0, %v294
        %v296 = vrot.slane %v214, %v295
        %v297 = vlaneseq
        %v298 = vshrl.u32 %v297, 7
        %v299 = vsub.s32 0, %v298
        %v300 = vrot.slane %v215, %v299
        %v301 = vlaneseq
        %v302 = vshrl.u32 %v301, 7
        %v303 = vsub.s32 0, %v302
        %v304 = vrot.slane %v216, %v303
        %v305 = vlaneseq
        %v306 = vshrl.u32 %v305, 7
        %v307 = vsub.s32 0, %v306
        %v308 = vrot.slane %v217, %v307
        %v309 = vlaneseq
        %v310 = vshrl.u32 %v309, 7
        %v311 = vsub.s32 0, %v310
        %v312 = vrot.slane %v218, %v311
        %v313 = vlaneseq
        %v314 = vshrl.u32 %v313, 7
        %v315 = vsub.s32 0, %v314
        %v316 = vrot.slane %v219, %v315
        %v317 = vlaneseq
        %v318 = vshrl.u32 %v317, 7
        %v319 = vsub.s32 0, %v318
        %v320 = vrot.slane %v220, %v319
        %v321 = vlaneseq
        %v322 = vshrl.u32 %v321, 7
        %v323 = vsub.s32 0, %v322
        %v324 = vrot.slane %v221, %v323
        %v325 = vlaneseq
        %v326 = vshrl.u32 %v325, 7
        %v327 = vsub.s32 0, %v326
        %v328 = vrot.slane %v222, %v327
        %v329 = vlaneseq
        %v330 = vshrl.u32 %v329, 7
        %v331 = vsub.s32 0, %v330
        %v332 = vrot.slane %v223, %v331
        %v333 = vlaneseq
        %v334 = vshrl.u32 %v333, 7
        %v335 = vsub.s32 0, %v334
        %v336 = vrot.slane %v224, %v335
        %v337 = vlaneseq
        %v338 = vshrl.u32 %v337, 7
        %v339 = vsub.s32 0, %v338
        %v340 = vrot.slane %v225, %v339
        %v341 = vlaneseq
        %v342 = vshrl.u32 %v341, 7
        %v343 = vsub.s32 0, %v342
        %v344 = vrot.slane %v226, %v343
        %v345 = vlaneseq
        %v346 = vshrl.u32 %v345, 7
        %v347 = vsub.s32 0, %v346
        %v348 = vrot.slane %v227, %v347
        %v349 = vlaneseq
        %v350 = vshrl.u32 %v349, 7
        %v351 = vsub.s32 0, %v350
        %v352 = vrot.slane %v228, %v351
        %v353 = vlaneseq
        %v354 = vshrl.u32 %v353, 7
        %v355 = vsub.s32 0, %v354
        %v356 = vrot.slane %v229, %v355
        %v357 = vlaneseq
        %v358 = vshrl.u32 %v357, 7
        %v359 = vsub.s32 0, %v358
        %v360 = vrot.slane %v230, %v359
        %v361 = vlaneseq
        %v362 = vshrl.u32 %v361, 7
        %v363 = vsub.s32 0, %v362
        %v364 = vrot.slane %v231, %v363
        %v365 = vlaneseq
        %v366 = vshrl.u32 %v365, 7
        %v367 = vsub.s32 0, %v366
        %v368 = vrot.slane %v232, %v367
        %v369 = vlaneseq
        %v370 = vshrl.u32 %v369, 7
        %v371 = vsub.s32 0, %v370
        %v372 = vrot.slane %v233, %v371
        %v373 = vlaneseq
        %v374 = vshrl.u32 %v373, 7
        %v375 = vsub.s32 0, %v374
        %v376 = vrot.slane %v234, %v375
        %v377 = vlaneseq
        %v378 = vshrl.u32 %v377, 7
        %v379 = vsub.s32 0, %v378
        %v380 = vrot.slane %v235, %v379
        %v381 = vlaneseq
        %v382 = vshrl.u32 %v381, 7
        %v383 = vsub.s32 0, %v382
        %v384 = vrot.slane %v236, %v383
        %v385 = vlaneseq
        %v386 = vshrl.u32 %v385, 7
        %v387 = vsub.s32 0, %v386
        %v388 = vrot.slane %v237, %v387
        %v389 = vlaneseq
        %v390 = vshrl.u32 %v389, 7
        %v391 = vsub.s32 0, %v390
        %v392 = vrot.slane %v238, %v391
        %v393 = vlaneseq
        %v394 = vshrl.u32 %v393, 7
        %v395 = vsub.s32 0, %v394
        %v396 = vrot.slane %v239, %v395
        %v397 = vlaneseq
        %v398 = vshrl.u32 %v397, 7
        %v399 = vsub.s32 0, %v398
        %v400 = vrot.slane %v240, %v399
        %vm433 = vcmask 130048
        %434 = vst.msk [vmem:[%s202] sm:$0xff] %vm433, %v276
        %435 = vst.msk [vmem:[%s202 + $0x8] sm:$0xff] %vm433, %v276
        %436 = vst.msk [vmem:[%s202 + $0x10] sm:$0xff] %vm433, %v280
        %437 = vst.msk [vmem:[%s202 + $0x18] sm:$0xff] %vm433, %v280
        %438 = vst.msk [vmem:[%s202 + $0x20] sm:$0xff] %vm433, %v284
        %439 = vst.msk [vmem:[%s202 + $0x28] sm:$0xff] %vm433, %v284
        %440 = vst.msk [vmem:[%s202 + $0x30] sm:$0xff] %vm433, %v288
        %441 = vst.msk [vmem:[%s202 + $0x38] sm:$0xff] %vm433, %v288
        %442 = vst.msk [vmem:[%s202 + $0x40] sm:$0xff] %vm433, %v292
        %443 = vst.msk [vmem:[%s202 + $0x48] sm:$0xff] %vm433, %v292
        %444 = vst.msk [vmem:[%s202 + $0x50] sm:$0xff] %vm433, %v296
        %445 = vst.msk [vmem:[%s202 + $0x58] sm:$0xff] %vm433, %v296
        %446 = vst.msk [vmem:[%s202 + $0x60] sm:$0xff] %vm433, %v300
        %447 = vst.msk [vmem:[%s202 + $0x68] sm:$0xff] %vm433, %v300
        %448 = vst.msk [vmem:[%s202 + $0x70] sm:$0xff] %vm433, %v304
        %449 = vst.msk [vmem:[%s202 + $0x78] sm:$0xff] %vm433, %v304
        %450 = vst.msk [vmem:[%s202 + $0x80] sm:$0xff] %vm433, %v308
        %451 = vst.msk [vmem:[%s202 + $0x88] sm:$0xff] %vm433, %v308
        %452 = vst.msk [vmem:[%s202 + $0x90] sm:$0xff] %vm433, %v312
        %453 = vst.msk [vmem:[%s202 + $0x98] sm:$0xff] %vm433, %v312
        %454 = vst.msk [vmem:[%s202 + $0xa0] sm:$0xff] %vm433, %v316
        %455 = vst.msk [vmem:[%s202 + $0xa8] sm:$0xff] %vm433, %v316
        %456 = vst.msk [vmem:[%s202 + $0xb0] sm:$0xff] %vm433, %v320
        %457 = vst.msk [vmem:[%s202 + $0xb8] sm:$0xff] %vm433, %v320
        %458 = vst.msk [vmem:[%s202 + $0xc0] sm:$0xff] %vm433, %v324
        %459 = vst.msk [vmem:[%s202 + $0xc8] sm:$0xff] %vm433, %v324
        %460 = vst.msk [vmem:[%s202 + $0xd0] sm:$0xff] %vm433, %v328
        %461 = vst.msk [vmem:[%s202 + $0xd8] sm:$0xff] %vm433, %v328
        %462 = vst.msk [vmem:[%s202 + $0xe0] sm:$0xff] %vm433, %v332
        %463 = vst.msk [vmem:[%s202 + $0xe8] sm:$0xff] %vm433, %v332
        %464 = vst.msk [vmem:[%s202 + $0xf0] sm:$0xff] %vm433, %v336
        %465 = vst.msk [vmem:[%s202 + $0xf8] sm:$0xff] %vm433, %v336
        %466 = vst.msk [vmem:[%s202 + $0x100] sm:$0xff] %vm433, %v340
        %467 = vst.msk [vmem:[%s202 + $0x108] sm:$0xff] %vm433, %v340
        %468 = vst.msk [vmem:[%s202 + $0x110] sm:$0xff] %vm433, %v344
        %469 = vst.msk [vmem:[%s202 + $0x118] sm:$0xff] %vm433, %v344
        %470 = vst.msk [vmem:[%s202 + $0x120] sm:$0xff] %vm433, %v348
        %471 = vst.msk [vmem:[%s202 + $0x128] sm:$0xff] %vm433, %v348
        %472 = vst.msk [vmem:[%s202 + $0x130] sm:$0xff] %vm433, %v352
        %473 = vst.msk [vmem:[%s202 + $0x138] sm:$0xff] %vm433, %v352
        %474 = vst.msk [vmem:[%s202 + $0x140] sm:$0xff] %vm433, %v356
        %475 = vst.msk [vmem:[%s202 + $0x148] sm:$0xff] %vm433, %v356
        %476 = vst.msk [vmem:[%s202 + $0x150] sm:$0xff] %vm433, %v360
        %477 = vst.msk [vmem:[%s202 + $0x158] sm:$0xff] %vm433, %v360
        %478 = vst.msk [vmem:[%s202 + $0x160] sm:$0xff] %vm433, %v364
        %479 = vst.msk [vmem:[%s202 + $0x168] sm:$0xff] %vm433, %v364
        %480 = vst.msk [vmem:[%s202 + $0x170] sm:$0xff] %vm433, %v368
        %481 = vst.msk [vmem:[%s202 + $0x178] sm:$0xff] %vm433, %v368
        %482 = vst.msk [vmem:[%s202 + $0x180] sm:$0xff] %vm433, %v372
        %483 = vst.msk [vmem:[%s202 + $0x188] sm:$0xff] %vm433, %v372
        %484 = vst.msk [vmem:[%s202 + $0x190] sm:$0xff] %vm433, %v376
        %485 = vst.msk [vmem:[%s202 + $0x198] sm:$0xff] %vm433, %v376
        %486 = vst.msk [vmem:[%s202 + $0x1a0] sm:$0xff] %vm433, %v380
        %487 = vst.msk [vmem:[%s202 + $0x1a8] sm:$0xff] %vm433, %v380
        %488 = vst.msk [vmem:[%s202 + $0x1b0] sm:$0xff] %vm433, %v384
        %489 = vst.msk [vmem:[%s202 + $0x1b8] sm:$0xff] %vm433, %v384
        %490 = vst.msk [vmem:[%s202 + $0x1c0] sm:$0xff] %vm433, %v388
        %491 = vst.msk [vmem:[%s202 + $0x1c8] sm:$0xff] %vm433, %v388
        %492 = vst.msk [vmem:[%s202 + $0x1d0] sm:$0xff] %vm433, %v392
        %493 = vst.msk [vmem:[%s202 + $0x1d8] sm:$0xff] %vm433, %v392
        %494 = vst.msk [vmem:[%s202 + $0x1e0] sm:$0xff] %vm433, %v396
        %495 = vst.msk [vmem:[%s202 + $0x1e8] sm:$0xff] %vm433, %v396
        %496 = vst.msk [vmem:[%s202 + $0x1f0] sm:$0xff] %vm433, %v400
        %497 = vst.msk [vmem:[%s202 + $0x1f8] sm:$0xff] %vm433, %v400
      $region32: #{tpu_custom_call.1} parent=27 // pred_fallthru
        _
      %p498 = scmp.eq.s32.totalorder %s19, 1
      // Predicated region
      $region33: #{tpu_custom_call.1} parent=27 // pred_check
        %p499 = pneg %p498
      $region34: #{tpu_custom_call.1} parent=27 // pred_check_branch
        %501 = sbr.rel (%p499) target = $region36
      $region35: #{tpu_custom_call.1} parent=27 // pred_region
        %v502 = vld [vmem:[%s190] sm:$0xff]
        %v503 = vld [vmem:[%s190 + $0x8] sm:$0xff]
        %v504 = vld [vmem:[%s190 + $0x10] sm:$0xff]
        %v505 = vld [vmem:[%s190 + $0x18] sm:$0xff]
        %v506 = vld [vmem:[%s190 + $0x20] sm:$0xff]
        %v507 = vld [vmem:[%s190 + $0x28] sm:$0xff]
        %v508 = vld [vmem:[%s190 + $0x30] sm:$0xff]
        %v509 = vld [vmem:[%s190 + $0x38] sm:$0xff]
        %v510 = vld [vmem:[%s190 + $0x40] sm:$0xff]
        %v511 = vld [vmem:[%s190 + $0x48] sm:$0xff]
        %v512 = vld [vmem:[%s190 + $0x50] sm:$0xff]
        %v513 = vld [vmem:[%s190 + $0x58] sm:$0xff]
        %v514 = vld [vmem:[%s190 + $0x60] sm:$0xff]
        %v515 = vld [vmem:[%s190 + $0x68] sm:$0xff]
        %v516 = vld [vmem:[%s190 + $0x70] sm:$0xff]
        %v517 = vld [vmem:[%s190 + $0x78] sm:$0xff]
        %v518 = vld [vmem:[%s190 + $0x80] sm:$0xff]
        %v519 = vld [vmem:[%s190 + $0x88] sm:$0xff]
        %v520 = vld [vmem:[%s190 + $0x90] sm:$0xff]
        %v521 = vld [vmem:[%s190 + $0x98] sm:$0xff]
        %v522 = vld [vmem:[%s190 + $0xa0] sm:$0xff]
        %v523 = vld [vmem:[%s190 + $0xa8] sm:$0xff]
        %v524 = vld [vmem:[%s190 + $0xb0] sm:$0xff]
        %v525 = vld [vmem:[%s190 + $0xb8] sm:$0xff]
        %v526 = vld [vmem:[%s190 + $0xc0] sm:$0xff]
        %v527 = vld [vmem:[%s190 + $0xc8] sm:$0xff]
        %v528 = vld [vmem:[%s190 + $0xd0] sm:$0xff]
        %v529 = vld [vmem:[%s190 + $0xd8] sm:$0xff]
        %v530 = vld [vmem:[%s190 + $0xe0] sm:$0xff]
        %v531 = vld [vmem:[%s190 + $0xe8] sm:$0xff]
        %v532 = vld [vmem:[%s190 + $0xf0] sm:$0xff]
        %v533 = vld [vmem:[%s190 + $0xf8] sm:$0xff]
        %v534 = vld [vmem:[%s190 + $0x100] sm:$0xff]
        %v535 = vld [vmem:[%s190 + $0x108] sm:$0xff]
        %v536 = vld [vmem:[%s190 + $0x110] sm:$0xff]
        %v537 = vld [vmem:[%s190 + $0x118] sm:$0xff]
        %v538 = vld [vmem:[%s190 + $0x120] sm:$0xff]
        %v539 = vld [vmem:[%s190 + $0x128] sm:$0xff]
        %v540 = vld [vmem:[%s190 + $0x130] sm:$0xff]
        %v541 = vld [vmem:[%s190 + $0x138] sm:$0xff]
        %v542 = vld [vmem:[%s190 + $0x140] sm:$0xff]
        %v543 = vld [vmem:[%s190 + $0x148] sm:$0xff]
        %v544 = vld [vmem:[%s190 + $0x150] sm:$0xff]
        %v545 = vld [vmem:[%s190 + $0x158] sm:$0xff]
        %v546 = vld [vmem:[%s190 + $0x160] sm:$0xff]
        %v547 = vld [vmem:[%s190 + $0x168] sm:$0xff]
        %v548 = vld [vmem:[%s190 + $0x170] sm:$0xff]
        %v549 = vld [vmem:[%s190 + $0x178] sm:$0xff]
        %v550 = vld [vmem:[%s190 + $0x180] sm:$0xff]
        %v551 = vld [vmem:[%s190 + $0x188] sm:$0xff]
        %v552 = vld [vmem:[%s190 + $0x190] sm:$0xff]
        %v553 = vld [vmem:[%s190 + $0x198] sm:$0xff]
        %v554 = vld [vmem:[%s190 + $0x1a0] sm:$0xff]
        %v555 = vld [vmem:[%s190 + $0x1a8] sm:$0xff]
        %v556 = vld [vmem:[%s190 + $0x1b0] sm:$0xff]
        %v557 = vld [vmem:[%s190 + $0x1b8] sm:$0xff]
        %v558 = vld [vmem:[%s190 + $0x1c0] sm:$0xff]
        %v559 = vld [vmem:[%s190 + $0x1c8] sm:$0xff]
        %v560 = vld [vmem:[%s190 + $0x1d0] sm:$0xff]
        %v561 = vld [vmem:[%s190 + $0x1d8] sm:$0xff]
        %v562 = vld [vmem:[%s190 + $0x1e0] sm:$0xff]
        %v563 = vld [vmem:[%s190 + $0x1e8] sm:$0xff]
        %v564 = vld [vmem:[%s190 + $0x1f0] sm:$0xff]
        %v565 = vld [vmem:[%s190 + $0x1f8] sm:$0xff]
        %567 = vset.pattern.permute.xlu0 0
        %568 = vperm.xlu0 %567, %v502
        %v569 = vpop.permute.xlu0 %568
        %572 = vset.pattern.permute.xlu0 0
        %573 = vperm.xlu0 %572, %v503
        %v574 = vpop.permute.xlu0 %573
        %577 = vset.pattern.permute.xlu0 0
        %578 = vperm.xlu0 %577, %v504
        %v579 = vpop.permute.xlu0 %578
        %582 = vset.pattern.permute.xlu0 0
        %583 = vperm.xlu0 %582, %v505
        %v584 = vpop.permute.xlu0 %583
        %587 = vset.pattern.permute.xlu0 0
        %588 = vperm.xlu0 %587, %v506
        %v589 = vpop.permute.xlu0 %588
        %592 = vset.pattern.permute.xlu0 0
        %593 = vperm.xlu0 %592, %v507
        %v594 = vpop.permute.xlu0 %593
        %597 = vset.pattern.permute.xlu0 0
        %598 = vperm.xlu0 %597, %v508
        %v599 = vpop.permute.xlu0 %598
        %602 = vset.pattern.permute.xlu0 0
        %603 = vperm.xlu0 %602, %v509
        %v604 = vpop.permute.xlu0 %603
        %607 = vset.pattern.permute.xlu0 0
        %608 = vperm.xlu0 %607, %v510
        %v609 = vpop.permute.xlu0 %608
        %612 = vset.pattern.permute.xlu0 0
        %613 = vperm.xlu0 %612, %v511
        %v614 = vpop.permute.xlu0 %613
        %617 = vset.pattern.permute.xlu0 0
        %618 = vperm.xlu0 %617, %v512
        %v619 = vpop.permute.xlu0 %618
        %622 = vset.pattern.permute.xlu0 0
        %623 = vperm.xlu0 %622, %v513
        %v624 = vpop.permute.xlu0 %623
        %627 = vset.pattern.permute.xlu0 0
        %628 = vperm.xlu0 %627, %v514
        %v629 = vpop.permute.xlu0 %628
        %632 = vset.pattern.permute.xlu0 0
        %633 = vperm.xlu0 %632, %v515
        %v634 = vpop.permute.xlu0 %633
        %637 = vset.pattern.permute.xlu0 0
        %638 = vperm.xlu0 %637, %v516
        %v639 = vpop.permute.xlu0 %638
        %642 = vset.pattern.permute.xlu0 0
        %643 = vperm.xlu0 %642, %v517
        %v644 = vpop.permute.xlu0 %643
        %647 = vset.pattern.permute.xlu0 0
        %648 = vperm.xlu0 %647, %v518
        %v649 = vpop.permute.xlu0 %648
        %652 = vset.pattern.permute.xlu0 0
        %653 = vperm.xlu0 %652, %v519
        %v654 = vpop.permute.xlu0 %653
        %657 = vset.pattern.permute.xlu0 0
        %658 = vperm.xlu0 %657, %v520
        %v659 = vpop.permute.xlu0 %658
        %662 = vset.pattern.permute.xlu0 0
        %663 = vperm.xlu0 %662, %v521
        %v664 = vpop.permute.xlu0 %663
        %667 = vset.pattern.permute.xlu0 0
        %668 = vperm.xlu0 %667, %v522
        %v669 = vpop.permute.xlu0 %668
        %672 = vset.pattern.permute.xlu0 0
        %673 = vperm.xlu0 %672, %v523
        %v674 = vpop.permute.xlu0 %673
        %677 = vset.pattern.permute.xlu0 0
        %678 = vperm.xlu0 %677, %v524
        %v679 = vpop.permute.xlu0 %678
        %682 = vset.pattern.permute.xlu0 0
        %683 = vperm.xlu0 %682, %v525
        %v684 = vpop.permute.xlu0 %683
        %687 = vset.pattern.permute.xlu0 0
        %688 = vperm.xlu0 %687, %v526
        %v689 = vpop.permute.xlu0 %688
        %692 = vset.pattern.permute.xlu0 0
        %693 = vperm.xlu0 %692, %v527
        %v694 = vpop.permute.xlu0 %693
        %697 = vset.pattern.permute.xlu0 0
        %698 = vperm.xlu0 %697, %v528
        %v699 = vpop.permute.xlu0 %698
        %702 = vset.pattern.permute.xlu0 0
        %703 = vperm.xlu0 %702, %v529
        %v704 = vpop.permute.xlu0 %703
        %707 = vset.pattern.permute.xlu0 0
        %708 = vperm.xlu0 %707, %v530
        %v709 = vpop.permute.xlu0 %708
        %712 = vset.pattern.permute.xlu0 0
        %713 = vperm.xlu0 %712, %v531
        %v714 = vpop.permute.xlu0 %713
        %717 = vset.pattern.permute.xlu0 0
        %718 = vperm.xlu0 %717, %v532
        %v719 = vpop.permute.xlu0 %718
        %722 = vset.pattern.permute.xlu0 0
        %723 = vperm.xlu0 %722, %v533
        %v724 = vpop.permute.xlu0 %723
        %727 = vset.pattern.permute.xlu0 0
        %728 = vperm.xlu0 %727, %v534
        %v729 = vpop.permute.xlu0 %728
        %732 = vset.pattern.permute.xlu0 0
        %733 = vperm.xlu0 %732, %v535
        %v734 = vpop.permute.xlu0 %733
        %737 = vset.pattern.permute.xlu0 0
        %738 = vperm.xlu0 %737, %v536
        %v739 = vpop.permute.xlu0 %738
        %742 = vset.pattern.permute.xlu0 0
        %743 = vperm.xlu0 %742, %v537
        %v744 = vpop.permute.xlu0 %743
        %747 = vset.pattern.permute.xlu0 0
        %748 = vperm.xlu0 %747, %v538
        %v749 = vpop.permute.xlu0 %748
        %752 = vset.pattern.permute.xlu0 0
        %753 = vperm.xlu0 %752, %v539
        %v754 = vpop.permute.xlu0 %753
        %757 = vset.pattern.permute.xlu0 0
        %758 = vperm.xlu0 %757, %v540
        %v759 = vpop.permute.xlu0 %758
        %762 = vset.pattern.permute.xlu0 0
        %763 = vperm.xlu0 %762, %v541
        %v764 = vpop.permute.xlu0 %763
        %767 = vset.pattern.permute.xlu0 0
        %768 = vperm.xlu0 %767, %v542
        %v769 = vpop.permute.xlu0 %768
        %772 = vset.pattern.permute.xlu0 0
        %773 = vperm.xlu0 %772, %v543
        %v774 = vpop.permute.xlu0 %773
        %777 = vset.pattern.permute.xlu0 0
        %778 = vperm.xlu0 %777, %v544
        %v779 = vpop.permute.xlu0 %778
        %782 = vset.pattern.permute.xlu0 0
        %783 = vperm.xlu0 %782, %v545
        %v784 = vpop.permute.xlu0 %783
        %787 = vset.pattern.permute.xlu0 0
        %788 = vperm.xlu0 %787, %v546
        %v789 = vpop.permute.xlu0 %788
        %792 = vset.pattern.permute.xlu0 0
        %793 = vperm.xlu0 %792, %v547
        %v794 = vpop.permute.xlu0 %793
        %797 = vset.pattern.permute.xlu0 0
        %798 = vperm.xlu0 %797, %v548
        %v799 = vpop.permute.xlu0 %798
        %802 = vset.pattern.permute.xlu0 0
        %803 = vperm.xlu0 %802, %v549
        %v804 = vpop.permute.xlu0 %803
        %807 = vset.pattern.permute.xlu0 0
        %808 = vperm.xlu0 %807, %v550
        %v809 = vpop.permute.xlu0 %808
        %812 = vset.pattern.permute.xlu0 0
        %813 = vperm.xlu0 %812, %v551
        %v814 = vpop.permute.xlu0 %813
        %817 = vset.pattern.permute.xlu0 0
        %818 = vperm.xlu0 %817, %v552
        %v819 = vpop.permute.xlu0 %818
        %822 = vset.pattern.permute.xlu0 0
        %823 = vperm.xlu0 %822, %v553
        %v824 = vpop.permute.xlu0 %823
        %827 = vset.pattern.permute.xlu0 0
        %828 = vperm.xlu0 %827, %v554
        %v829 = vpop.permute.xlu0 %828
        %832 = vset.pattern.permute.xlu0 0
        %833 = vperm.xlu0 %832, %v555
        %v834 = vpop.permute.xlu0 %833
        %837 = vset.pattern.permute.xlu0 0
        %838 = vperm.xlu0 %837, %v556
        %v839 = vpop.permute.xlu0 %838
        %842 = vset.pattern.permute.xlu0 0
        %843 = vperm.xlu0 %842, %v557
        %v844 = vpop.permute.xlu0 %843
        %847 = vset.pattern.permute.xlu0 0
        %848 = vperm.xlu0 %847, %v558
        %v849 = vpop.permute.xlu0 %848
        %852 = vset.pattern.permute.xlu0 0
        %853 = vperm.xlu0 %852, %v559
        %v854 = vpop.permute.xlu0 %853
        %857 = vset.pattern.permute.xlu0 0
        %858 = vperm.xlu0 %857, %v560
        %v859 = vpop.permute.xlu0 %858
        %862 = vset.pattern.permute.xlu0 0
        %863 = vperm.xlu0 %862, %v561
        %v864 = vpop.permute.xlu0 %863
        %867 = vset.pattern.permute.xlu0 0
        %868 = vperm.xlu0 %867, %v562
        %v869 = vpop.permute.xlu0 %868
        %872 = vset.pattern.permute.xlu0 0
        %873 = vperm.xlu0 %872, %v563
        %v874 = vpop.permute.xlu0 %873
        %877 = vset.pattern.permute.xlu0 0
        %878 = vperm.xlu0 %877, %v564
        %v879 = vpop.permute.xlu0 %878
        %882 = vset.pattern.permute.xlu0 0
        %883 = vperm.xlu0 %882, %v565
        %v884 = vpop.permute.xlu0 %883
        %vm886 = vcmask 130048
        %887 = vst.msk [vmem:[%s202] sm:$0xff] %vm886, %v569
        %888 = vst.msk [vmem:[%s202 + $0x8] sm:$0xff] %vm886, %v574
        %889 = vst.msk [vmem:[%s202 + $0x10] sm:$0xff] %vm886, %v579
        %890 = vst.msk [vmem:[%s202 + $0x18] sm:$0xff] %vm886, %v584
        %891 = vst.msk [vmem:[%s202 + $0x20] sm:$0xff] %vm886, %v589
        %892 = vst.msk [vmem:[%s202 + $0x28] sm:$0xff] %vm886, %v594
        %893 = vst.msk [vmem:[%s202 + $0x30] sm:$0xff] %vm886, %v599
        %894 = vst.msk [vmem:[%s202 + $0x38] sm:$0xff] %vm886, %v604
        %895 = vst.msk [vmem:[%s202 + $0x40] sm:$0xff] %vm886, %v609
        %896 = vst.msk [vmem:[%s202 + $0x48] sm:$0xff] %vm886, %v614
        %897 = vst.msk [vmem:[%s202 + $0x50] sm:$0xff] %vm886, %v619
        %898 = vst.msk [vmem:[%s202 + $0x58] sm:$0xff] %vm886, %v624
        %899 = vst.msk [vmem:[%s202 + $0x60] sm:$0xff] %vm886, %v629
        %900 = vst.msk [vmem:[%s202 + $0x68] sm:$0xff] %vm886, %v634
        %901 = vst.msk [vmem:[%s202 + $0x70] sm:$0xff] %vm886, %v639
        %902 = vst.msk [vmem:[%s202 + $0x78] sm:$0xff] %vm886, %v644
        %903 = vst.msk [vmem:[%s202 + $0x80] sm:$0xff] %vm886, %v649
        %904 = vst.msk [vmem:[%s202 + $0x88] sm:$0xff] %vm886, %v654
        %905 = vst.msk [vmem:[%s202 + $0x90] sm:$0xff] %vm886, %v659
        %906 = vst.msk [vmem:[%s202 + $0x98] sm:$0xff] %vm886, %v664
        %907 = vst.msk [vmem:[%s202 + $0xa0] sm:$0xff] %vm886, %v669
        %908 = vst.msk [vmem:[%s202 + $0xa8] sm:$0xff] %vm886, %v674
        %909 = vst.msk [vmem:[%s202 + $0xb0] sm:$0xff] %vm886, %v679
        %910 = vst.msk [vmem:[%s202 + $0xb8] sm:$0xff] %vm886, %v684
        %911 = vst.msk [vmem:[%s202 + $0xc0] sm:$0xff] %vm886, %v689
        %912 = vst.msk [vmem:[%s202 + $0xc8] sm:$0xff] %vm886, %v694
        %913 = vst.msk [vmem:[%s202 + $0xd0] sm:$0xff] %vm886, %v699
        %914 = vst.msk [vmem:[%s202 + $0xd8] sm:$0xff] %vm886, %v704
        %915 = vst.msk [vmem:[%s202 + $0xe0] sm:$0xff] %vm886, %v709
        %916 = vst.msk [vmem:[%s202 + $0xe8] sm:$0xff] %vm886, %v714
        %917 = vst.msk [vmem:[%s202 + $0xf0] sm:$0xff] %vm886, %v719
        %918 = vst.msk [vmem:[%s202 + $0xf8] sm:$0xff] %vm886, %v724
        %919 = vst.msk [vmem:[%s202 + $0x100] sm:$0xff] %vm886, %v729
        %920 = vst.msk [vmem:[%s202 + $0x108] sm:$0xff] %vm886, %v734
        %921 = vst.msk [vmem:[%s202 + $0x110] sm:$0xff] %vm886, %v739
        %922 = vst.msk [vmem:[%s202 + $0x118] sm:$0xff] %vm886, %v744
        %923 = vst.msk [vmem:[%s202 + $0x120] sm:$0xff] %vm886, %v749
        %924 = vst.msk [vmem:[%s202 + $0x128] sm:$0xff] %vm886, %v754
        %925 = vst.msk [vmem:[%s202 + $0x130] sm:$0xff] %vm886, %v759
        %926 = vst.msk [vmem:[%s202 + $0x138] sm:$0xff] %vm886, %v764
        %927 = vst.msk [vmem:[%s202 + $0x140] sm:$0xff] %vm886, %v769
        %928 = vst.msk [vmem:[%s202 + $0x148] sm:$0xff] %vm886, %v774
        %929 = vst.msk [vmem:[%s202 + $0x150] sm:$0xff] %vm886, %v779
        %930 = vst.msk [vmem:[%s202 + $0x158] sm:$0xff] %vm886, %v784
        %931 = vst.msk [vmem:[%s202 + $0x160] sm:$0xff] %vm886, %v789
        %932 = vst.msk [vmem:[%s202 + $0x168] sm:$0xff] %vm886, %v794
        %933 = vst.msk [vmem:[%s202 + $0x170] sm:$0xff] %vm886, %v799
        %934 = vst.msk [vmem:[%s202 + $0x178] sm:$0xff] %vm886, %v804
        %935 = vst.msk [vmem:[%s202 + $0x180] sm:$0xff] %vm886, %v809
        %936 = vst.msk [vmem:[%s202 + $0x188] sm:$0xff] %vm886, %v814
        %937 = vst.msk [vmem:[%s202 + $0x190] sm:$0xff] %vm886, %v819
        %938 = vst.msk [vmem:[%s202 + $0x198] sm:$0xff] %vm886, %v824
        %939 = vst.msk [vmem:[%s202 + $0x1a0] sm:$0xff] %vm886, %v829
        %940 = vst.msk [vmem:[%s202 + $0x1a8] sm:$0xff] %vm886, %v834
        %941 = vst.msk [vmem:[%s202 + $0x1b0] sm:$0xff] %vm886, %v839
        %942 = vst.msk [vmem:[%s202 + $0x1b8] sm:$0xff] %vm886, %v844
        %943 = vst.msk [vmem:[%s202 + $0x1c0] sm:$0xff] %vm886, %v849
        %944 = vst.msk [vmem:[%s202 + $0x1c8] sm:$0xff] %vm886, %v854
        %945 = vst.msk [vmem:[%s202 + $0x1d0] sm:$0xff] %vm886, %v859
        %946 = vst.msk [vmem:[%s202 + $0x1d8] sm:$0xff] %vm886, %v864
        %947 = vst.msk [vmem:[%s202 + $0x1e0] sm:$0xff] %vm886, %v869
        %948 = vst.msk [vmem:[%s202 + $0x1e8] sm:$0xff] %vm886, %v874
        %949 = vst.msk [vmem:[%s202 + $0x1f0] sm:$0xff] %vm886, %v879
        %950 = vst.msk [vmem:[%s202 + $0x1f8] sm:$0xff] %vm886, %v884
      $region36: #{tpu_custom_call.1} parent=27 // pred_fallthru
        _
      %s951 = sadd.s32 %s19, %s18
      %s952 = smul.u32 32, %s951
      %p953 = scmp.lt.s32.totalorder %s20, 1
      %s954 = scalar_select %p953, %s20, 1
      %p955 = scmp.lt.s32.totalorder %s952, 63
      %s956 = scalar_select %p955, %s952, 63
      %s957 = smul.addr %s956, 2
      %s958 = smul.addr %s954, 128
      %s959 = sadd.s32 %s957, %s958
      %s960 = smul.addr %s959, 8
      %s961 = scalar_lea.vmem %s2, %s960
      // Predicated region
      $region37: #{tpu_custom_call.1} parent=27 // pred_check
        %p962 = pneg %p106
      $region38: #{tpu_custom_call.1} parent=27 // pred_check_branch
        %964 = sbr.rel (%p962) target = $region40
      $region39: #{tpu_custom_call.1} parent=27 // pred_region
        %s965 = sadd.s32 %s19, %s18
        %s966 = smul.u32 32, %s965
      $region40: #{tpu_custom_call.1} parent=27 // pred_fallthru
        _
    $region28: #{tpu_custom_call.1} parent=5 // pred_fallthru
      _
    %p967 = scmp.le.s32.totalorder 2, %s8
    // Predicated region
    $region41: #{tpu_custom_call.1} parent=5 // pred_check
      %p968 = pneg %p967
    $region42: #{tpu_custom_call.1} parent=5 // pred_check_branch
      %970 = sbr.rel (%p968) target = $region44
    $region43: #{tpu_custom_call.1} parent=5 // pred_region
      %s971 = ssub.s32 %s8, 2
      // Predicated region
      $region45: #{tpu_custom_call.1} parent=43 // pred_check
        %p972 = pneg %p112
      $region46: #{tpu_custom_call.1} parent=43 // pred_check_branch
        %974 = sbr.rel (%p972) target = $region48
      $region47: #{tpu_custom_call.1} parent=43 // pred_region
        %s975 = sadd.s32 %s22, %s21
        %s976 = smul.u32 32, %s975
        %p977 = scmp.lt.s32.totalorder %s23, 1
        %s978 = scalar_select %p977, %s23, 1
        %p979 = scmp.lt.s32.totalorder %s976, 63
        %s980 = scalar_select %p979, %s976, 63
        %s981 = smul.addr %s980, 2
        %s982 = smul.addr %s978, 128
        %s983 = sadd.s32 %s981, %s982
        %s984 = smul.addr %s983, 8
        %s985 = scalar_lea.vmem %s2, %s984
      $region48: #{tpu_custom_call.1} parent=43 // pred_fallthru
        _
    $region44: #{tpu_custom_call.1} parent=5 // pred_fallthru
      _
  $region6: #{tpu_custom_call.1} parent=0 // loop_footer
    %s12 = sadd.s32 1, %s8
  $region7: #{tpu_custom_call.1} parent=0 // loop_footer_branch
    %7 = sbr.rel target = $region3
  $region8: #{tpu_custom_call.1} parent=0 // loop_exit
    _

</llo_original>
